<compile_context>
chip_gen: v6e
topology: v6e:2x2x1
jax: 0.10.0
libtpu: 0.0.40
codegen_flags: <defaults>
</compile_context>

<pallas_src>
import jax
import jax.numpy as jnp
from jax.experimental import pallas as pl
from jax.experimental.pallas import tpu as pltpu


def _round_up(x, m):
    return (x + m - 1) // m * m


def _vmem_budget_bytes():
    """(tile-sizing budget, vmem_limit_bytes) derived from the actual chip."""
    try:
        cap = pltpu.get_tpu_info().vmem_capacity_bytes
    except Exception:
        cap = 64 * 1024 * 1024  # conservative default: v7x per-TC VMEM
    return int(cap * 0.70), int(cap * 0.85)


def _choose_tiles(N, Fin_pad, Fout_pad, budget_bytes):
    """Pick (N_pad, TM, TK): TK = neighbour/reduction tile, TM = output-row tile.

    Strategy: pick the biggest TK that fits, pad N to a multiple of TK, then
    make the output-row tile the whole padded graph (fully resident output,
    zero projection recompute) whenever the budget allows; otherwise split
    rows into the fewest TK-multiple tiles that fit.
    """
    itemsize = 4  # everything streamed/accumulated in f32

    def cost(tm, tk):
        resident = (2 * Fin_pad * Fout_pad      # weight (constant index_map)
                    + 2 * 8 * Fout_pad          # bias (tiny)
                    + 2 * tm * Fout_pad)        # resident/accumulating output block
        streamed = (2 * tk * Fin_pad            # x tile, double-buffered
                    + 2 * tm * tk)              # adj tile, double-buffered
        scratch = tk * Fout_pad                 # s_k intermediate
        return (resident + streamed + scratch) * itemsize

    n128 = _round_up(N, 128)

    # Reduction tile: large (fewer grid steps, lane-dense DMAs) but bounded.
    TK = min(2048, n128)
    while TK > 128 and cost(TK, TK) > budget_bytes:
        TK -= 128
    TK = max(TK, 128)
    # TODO(synk): add a Fin reduction tile for extreme feature widths where
    # even (TK=128, Fin_pad) x-tiles + resident weight exceed v7x's 64 MiB.

    N_pad = _round_up(N, TK)

    n_row_tiles = 1
    while True:
        TM = _round_up(pl.cdiv(N_pad, n_row_tiles), TK)  # multiple of TK
        if cost(TM, TK) <= budget_bytes or TM == TK:
            break
        n_row_tiles += 1
    N_pad = n_row_tiles * TM  # TM | N_pad and TK | TM, so TK | N_pad

    return N_pad, TM, TK


# ---------------------------------------------------------------------------
# Fused kernel: per (b, i, k) step
#   s_k       = x[b, kTK:(k+1)TK, :] @ W                (MXU, f32)
#   out[b,i] += adj[b, iTM:(i+1)TM, kTK:(k+1)TK] @ s_k  (MXU, f32, resident)
# ---------------------------------------------------------------------------
def _gcn_fused_kernel(x_ref, adj_ref, w_ref, b_ref, o_ref):
    # x_ref: (TK, Fin_pad)  adj_ref: (TM, TK)  w_ref: (Fin_pad, Fout_pad)
    # b_ref: (1, Fout_pad)  o_ref:  (TM, Fout_pad) f32 (resident across k)
    k = pl.program_id(2)

    @pl.when(k == 0)
    def _():
        o_ref[...] = jnp.zeros_like(o_ref)

    s_k = jnp.dot(x_ref[...], w_ref[...], preferred_element_type=jnp.float32)
    o_ref[...] += jnp.dot(adj_ref[...], s_k, preferred_element_type=jnp.float32)

    @pl.when(k == pl.num_programs(2) - 1)
    def _():
        o_ref[...] += b_ref[...]


def graph_convolution(x, adj, weight, bias=None):
    """GCN forward.  x: (B,N,Fin), adj: (B,N,N), weight: (Fin,Fout), bias: (Fout,)."""
    B, N, Fin = x.shape
    Fout = weight.shape[1]

    Fin_pad = _round_up(Fin, 128)
    Fout_pad = _round_up(Fout, 128)
    budget, vmem_limit = _vmem_budget_bytes()
    N_pad, TM, TK = _choose_tiles(N, Fin_pad, Fout_pad, budget)

    # Exact zero padding (padded adj rows/cols and feature cols contribute 0;
    # padded output rows/cols are sliced away).  adj stays in its native f32 —
    # no wrapper-side bf16 cast (it would double total adjacency HBM traffic).
    x_p = jnp.pad(x, ((0, 0), (0, N_pad - N), (0, Fin_pad - Fin))).astype(jnp.float32)
    adj_p = jnp.pad(adj, ((0, 0), (0, N_pad - N), (0, N_pad - N))).astype(jnp.float32)
    w_p = jnp.pad(weight, ((0, Fin_pad - Fin), (0, Fout_pad - Fout))).astype(jnp.float32)
    if bias is None:
        b_p = jnp.zeros((1, Fout_pad), jnp.float32)
    else:
        b_p = jnp.pad(bias.reshape(1, Fout),
                      ((0, 0), (0, Fout_pad - Fout))).astype(jnp.float32)

    # Megacore note (v7x): the two 'parallel' axes give B * (N_pad//TM) steps;
    # even B (or multiple row tiles) keeps both TensorCores busy.
    grid = (B, N_pad // TM, N_pad // TK)

    out_p = pl.pallas_call(
        _gcn_fused_kernel,
        out_shape=jax.ShapeDtypeStruct((B, N_pad, Fout_pad), jnp.float32),
        grid_spec=pltpu.PrefetchScalarGridSpec(
            num_scalar_prefetch=0,
            grid=grid,
            in_specs=[
                # x neighbour tile: depends only on (b, k)
                pl.BlockSpec((None, TK, Fin_pad), lambda b, i, k: (b, k, 0)),
                # adjacency tile of the current graph
                pl.BlockSpec((None, TM, TK), lambda b, i, k: (b, i, k)),
                # weight / bias: constant index_map -> resident in VMEM
                pl.BlockSpec((Fin_pad, Fout_pad), lambda b, i, k: (0, 0)),
                pl.BlockSpec((1, Fout_pad), lambda b, i, k: (0, 0)),
            ],
            # same output block across the k axis -> f32 accumulator-resident
            out_specs=pl.BlockSpec((None, TM, Fout_pad), lambda b, i, k: (b, i, 0)),
        ),
        compiler_params=pltpu.CompilerParams(
            dimension_semantics=("parallel", "parallel", "arbitrary"),
            vmem_limit_bytes=vmem_limit,
        ),
    )(x_p, adj_p, w_p, b_p)

    return out_p[:, :N, :Fout].astype(x.dtype)


if __name__ == "__main__":
    # Small, module-consistent shapes.
    B, N, Fin, Fout = 2, 16, 32, 32

    key = jax.random.PRNGKey(0)
    k_x, k_adj, k_w, k_b = jax.random.split(key, 4)

    # Deterministic parameter init mirroring reset_parameters():
    # uniform(-stdv, stdv) with stdv = 1/sqrt(out_features)
    stdv = 1.0 / (Fout ** 0.5)
    weight = jax.random.uniform(k_w, (Fin, Fout), jnp.float32, -stdv, stdv)
    bias = jax.random.uniform(k_b, (Fout,), jnp.float32, -stdv, stdv)

    x = jax.random.normal(k_x, (B, N, Fin), jnp.float32)
    adj = jax.random.uniform(k_adj, (B, N, N), jnp.float32)

    # Reference in plain JAX (same math as the PyTorch forward), f32.
    support_ref = jnp.einsum("ijk,kh->ijh", x, weight)
    ref = jnp.einsum("ijk,ikh->ijh", adj, support_ref) + bias

    gcn = jax.jit(graph_convolution)
    out = jax.block_until_ready(gcn(x, adj, weight, bias))
    assert out.shape == (B, N, Fout)
    max_err = float(jnp.max(jnp.abs(out - ref)))
    assert jnp.allclose(out, ref, atol=1e-4, rtol=1e-4), max_err

    # bias=None path (module supports it).
    out_nb = jax.block_until_ready(jax.jit(graph_convolution)(x, adj, weight, None))
    assert jnp.allclose(out_nb, ref - bias, atol=1e-4, rtol=1e-4)

    print("KERNEL_OK")
</pallas_src>

<mosaic_0001>
module attributes {stable_mosaic.version = 11 : i64} {
  func.func @_gcn_fused_kernel(%arg0: i32, %arg1: i32, %arg2: i32, %arg3: memref<1x128x128xf32, #tpu.memory_space<vmem>>, %arg4: memref<1x128x128xf32, #tpu.memory_space<vmem>>, %arg5: memref<128x128xf32, #tpu.memory_space<vmem>>, %arg6: memref<1x128xf32, #tpu.memory_space<vmem>>, %arg7: memref<1x128x128xf32, #tpu.memory_space<vmem>>) attributes {dimension_semantics = [#tpu.dimension_semantics<parallel>, #tpu.dimension_semantics<parallel>, #tpu.dimension_semantics<arbitrary>], iteration_bounds = array<i64: 2, 1, 1>, scalar_prefetch = 0 : i64, scratch_operands = 0 : i64, tpu.core_type = #tpu.core_type<tc>, window_params = [{transform_indices = @transform_0, window_bounds = array<i64: 1, 128, 128>}, {transform_indices = @transform_1, window_bounds = array<i64: 1, 128, 128>}, {pipeline_mode = #tpu.pipeline_mode<synchronous>, transform_indices = @transform_2, window_bounds = array<i64: 128, 128>}, {pipeline_mode = #tpu.pipeline_mode<synchronous>, transform_indices = @transform_3, window_bounds = array<i64: 1, 128>}, {transform_indices = @transform_4, window_bounds = array<i64: 1, 128, 128>}]} {
    %c0_i32 = arith.constant 0 : i32
    %0 = arith.cmpi eq, %arg2, %c0_i32 : i32
    %1 = arith.extui %0 : i1 to i32
    %c0_i32_0 = arith.constant 0 : i32
    %2 = arith.cmpi ne, %1, %c0_i32_0 : i32
    scf.if %2 {
      %cst_17 = arith.constant 0.000000e+00 : f32
      %19 = vector.broadcast %cst_17 : f32 to vector<128x128xf32>
      %c0_18 = arith.constant 0 : index
      %c0_19 = arith.constant 0 : index
      %c0_20 = arith.constant 0 : index
      %20 = vector.load %arg7[%c0_18, %c0_19, %c0_20] : memref<1x128x128xf32, #tpu.memory_space<vmem>>, vector<1x128x128xf32>
      %21 = vector.shape_cast %20 : vector<1x128x128xf32> to vector<128x128xf32>
      %22 = vector.shape_cast %19 : vector<128x128xf32> to vector<1x128x128xf32>
      tpu.vector_store %arg7[%c0_18, %c0_19, %c0_20], %22 {strides = array<i32>} : memref<1x128x128xf32, #tpu.memory_space<vmem>>, vector<1x128x128xf32>,
    } else {
    }
    %c0 = arith.constant 0 : index
    %c0_1 = arith.constant 0 : index
    %c0_2 = arith.constant 0 : index
    %3 = vector.load %arg3[%c0, %c0_1, %c0_2] : memref<1x128x128xf32, #tpu.memory_space<vmem>>, vector<1x128x128xf32>
    %4 = vector.shape_cast %3 : vector<1x128x128xf32> to vector<128x128xf32>
    %c0_3 = arith.constant 0 : index
    %c0_4 = arith.constant 0 : index
    %5 = vector.load %arg5[%c0_3, %c0_4] : memref<128x128xf32, #tpu.memory_space<vmem>>, vector<128x128xf32>
    %cst = arith.constant dense<0.000000e+00> : vector<128x128xf32>
    %6 = tpu.matmul %4, %5, %cst {dimension_numbers = #tpu.dot_dimension_numbers<[1], [0], [0], [1], [0, 0, 1, 1], [], []>} : vector<128x128xf32>, vector<128x128xf32>, vector<128x128xf32> -> vector<128x128xf32>
    %c0_5 = arith.constant 0 : index
    %c0_6 = arith.constant 0 : index
    %c0_7 = arith.constant 0 : index
    %7 = vector.load %arg7[%c0_5, %c0_6, %c0_7] : memref<1x128x128xf32, #tpu.memory_space<vmem>>, vector<1x128x128xf32>
    %8 = vector.shape_cast %7 : vector<1x128x128xf32> to vector<128x128xf32>
    %c0_8 = arith.constant 0 : index
    %c0_9 = arith.constant 0 : index
    %c0_10 = arith.constant 0 : index
    %9 = vector.load %arg4[%c0_8, %c0_9, %c0_10] : memref<1x128x128xf32, #tpu.memory_space<vmem>>, vector<1x128x128xf32>
    %10 = vector.shape_cast %9 : vector<1x128x128xf32> to vector<128x128xf32>
    %cst_11 = arith.constant dense<0.000000e+00> : vector<128x128xf32>
    %11 = tpu.matmul %10, %6, %cst_11 {dimension_numbers = #tpu.dot_dimension_numbers<[1], [0], [0], [1], [0, 0, 1, 1], [], []>} : vector<128x128xf32>, vector<128x128xf32>, vector<128x128xf32> -> vector<128x128xf32>
    %12 = arith.addf %8, %11 : vector<128x128xf32>
    %c0_12 = arith.constant 0 : index
    %c0_13 = arith.constant 0 : index
    %c0_14 = arith.constant 0 : index
    %13 = vector.load %arg7[%c0_12, %c0_13, %c0_14] : memref<1x128x128xf32, #tpu.memory_space<vmem>>, vector<1x128x128xf32>
    %14 = vector.shape_cast %13 : vector<1x128x128xf32> to vector<128x128xf32>
    %15 = vector.shape_cast %12 : vector<128x128xf32> to vector<1x128x128xf32>
    tpu.vector_store %arg7[%c0_12, %c0_13, %c0_14], %15 {strides = array<i32>} : memref<1x128x128xf32, #tpu.memory_space<vmem>>, vector<1x128x128xf32>,
    %c0_i32_15 = arith.constant 0 : i32
    %16 = arith.cmpi eq, %arg2, %c0_i32_15 : i32
    %17 = arith.extui %16 : i1 to i32
    %c0_i32_16 = arith.constant 0 : i32
    %18 = arith.cmpi ne, %17, %c0_i32_16 : i32
    scf.if %18 {
      %c0_17 = arith.constant 0 : index
      %c0_18 = arith.constant 0 : index
      %c0_19 = arith.constant 0 : index
      %19 = vector.load %arg7[%c0_17, %c0_18, %c0_19] : memref<1x128x128xf32, #tpu.memory_space<vmem>>, vector<1x128x128xf32>
      %20 = vector.shape_cast %19 : vector<1x128x128xf32> to vector<128x128xf32>
      %c0_20 = arith.constant 0 : index
      %c0_21 = arith.constant 0 : index
      %21 = vector.load %arg6[%c0_20, %c0_21] : memref<1x128xf32, #tpu.memory_space<vmem>>, vector<1x128xf32>
      %22 = vector.broadcast %21 : vector<1x128xf32> to vector<128x128xf32>
      %23 = arith.addf %20, %22 : vector<128x128xf32>
      %c0_22 = arith.constant 0 : index
      %c0_23 = arith.constant 0 : index
      %c0_24 = arith.constant 0 : index
      %24 = vector.load %arg7[%c0_22, %c0_23, %c0_24] : memref<1x128x128xf32, #tpu.memory_space<vmem>>, vector<1x128x128xf32>
      %25 = vector.shape_cast %24 : vector<1x128x128xf32> to vector<128x128xf32>
      %26 = vector.shape_cast %23 : vector<128x128xf32> to vector<1x128x128xf32>
      tpu.vector_store %arg7[%c0_22, %c0_23, %c0_24], %26 {strides = array<i32>} : memref<1x128x128xf32, #tpu.memory_space<vmem>>, vector<1x128x128xf32>,
    } else {
    }
    return
  }
  func.func @transform_0(%arg0: i32, %arg1: i32, %arg2: i32) -> (i32, i32, i32) {
    %c0_i32 = arith.constant 0 : i32
    %c0_i32_0 = arith.constant 0 : i32
    return %arg0, %arg2, %c0_i32 : i32, i32, i32
  }
  func.func @transform_1(%arg0: i32, %arg1: i32, %arg2: i32) -> (i32, i32, i32) {
    %c0_i32 = arith.constant 0 : i32
    return %arg0, %arg1, %arg2 : i32, i32, i32
  }
  func.func @transform_2(%arg0: i32, %arg1: i32, %arg2: i32) -> (i32, i32) {
    %c0_i32 = arith.constant 0 : i32
    %c0_i32_0 = arith.constant 0 : i32
    %c0_i32_1 = arith.constant 0 : i32
    return %c0_i32, %c0_i32_0 : i32, i32
  }
  func.func @transform_3(%arg0: i32, %arg1: i32, %arg2: i32) -> (i32, i32) {
    %c0_i32 = arith.constant 0 : i32
    %c0_i32_0 = arith.constant 0 : i32
    %c0_i32_1 = arith.constant 0 : i32
    return %c0_i32, %c0_i32_0 : i32, i32
  }
  func.func @transform_4(%arg0: i32, %arg1: i32, %arg2: i32) -> (i32, i32, i32) {
    %c0_i32 = arith.constant 0 : i32
    %c0_i32_0 = arith.constant 0 : i32
    return %arg0, %arg1, %c0_i32 : i32, i32, i32
  }
}

</mosaic_0001>

<llo_original>
// kernel: graph_convolution.1
$region0: #{graph_convolution.1}
  #allocation0 [shape = 'u32[]', space=smem, size = 0x4, offset = 0x4, fixed_abs, tag = 'smem constant byte address 0x4 - core index']
  #allocation1 [shape = 'u32[144,128]{1,0:T(1,128)}', space=vmem, size = 0x12000, scoped, tag = 'internal scratch']
  %s0 = inlined_call_operand.vmem [shape: f32[2,128,128], index: 0, kind: input, shape index: {}]
  %s1 = inlined_call_operand.vmem [shape: f32[2,128,128], index: 1, kind: input, shape index: {}]
  %s2 = inlined_call_operand.vmem [shape: f32[128,128], index: 2, kind: input, shape index: {}]
  %s3 = inlined_call_operand.vmem [shape: f32[1,128], index: 3, kind: input, shape index: {}]
  %s4 = inlined_call_operand.vmem [shape: f32[2,128,128], index: 4, kind: output, shape index: {}]
  %s5 = sld [smem:[#allocation0]]
  $region57: #{graph_convolution.1} parent=0
    _
  %s7 = ssub.s32 1, %s5
  %s8 = scalar_select 0, %s7, %s5
  loop: start=0, step=1, limit=4
  $region2: #{graph_convolution.1} parent=0 // loop_pre_header
    _
  $region3: #{graph_convolution.1} parent=0 // loop_header
    %s10 = sphi 0, %s14
    %p11 = scmp.ge.s32.totalorder %s10, 4
    %s17 = sphi 0, %s36
    %s18 = sphi 0, %s32
    %s19 = sphi 0, %s28
    %s20 = sphi 0, %s17
    %s21 = sphi 0, %s18
    %s22 = sphi 0, %s19
    %s23 = sphi 0, %s20
    %s24 = sphi 0, %s21
    %s25 = sphi 0, %s22
    %s41 = sphi 0, %s43
    %s44 = sphi 0, %s41
    %s45 = sphi 0, %s44
    %s61 = sphi 0, %s45
    %s71 = sphi 0, %s73
    %s74 = sphi 0, %s71
    %s75 = sphi 0, %s74
    %s91 = sphi 0, %s75
    %s95 = sphi 0, %s95
    %s97 = sphi 0, %s95
    %s98 = sphi 0, %s97
    %s112 = sphi 0, %s98
    %s116 = sphi 0, %s116
    %s118 = sphi 0, %s116
    %s119 = sphi 0, %s118
    %s133 = sphi 0, %s119
    %s141 = sphi 0, %s143
    %s144 = sphi 0, %s141
    %s145 = sphi 0, %s144
    %s161 = sphi 0, %s145
  $region4: #{graph_convolution.1} parent=0 // loop_header_branch
    %13 = sbr.rel (%p11) target = $region8
  $region5: #{graph_convolution.1} parent=0 // loop_body
    %s15 = ssub.s32 %s10, 1
    %s16 = ssub.s32 %s10, 2
    %s26 = sadd.s32 1, %s19
    %p27 = scmp.ge.s32.totalorder %s26, 1
    %s28 = scalar_select %p27, 0, %s26
    %s29 = sadd.s32 1, %s18
    %s30 = scalar_select %p27, %s29, %s18
    %p31 = scmp.ge.s32.totalorder %s30, 1
    %s32 = scalar_select %p31, 0, %s30
    %s33 = sadd.s32 1, %s17
    %s34 = scalar_select %p31, %s33, %s17
    %p35 = scmp.ge.s32.totalorder %s34, 2
    %s36 = scalar_select %p35, 0, %s34
    %s37 = ssub.s32 %s17, %s36
    %s38 = ssub.s32 %s19, %s28
    %s39 = sor.u32 %s37, %s38
    %p40 = scmp.eq.s32.totalorder %s39, 0
    %s42 = sadd.s32 %s41, 1
    %s43 = scalar_select %p40, %s41, %s42
    %p46 = pneg %p40
    %p47 = scmp.eq.s32.totalorder %s10, 1
    %p48 = por %p46, %p47
    %p49 = scmp.ne.s32.totalorder %s41, %s44
    %p50 = scmp.eq.s32.totalorder %s10, 0
    %p51 = por %p49, %p50
    %p52 = scmp.ne.s32.totalorder %s41, %s44
    %p53 = scmp.eq.s32.totalorder %s15, 1
    %p54 = por %p52, %p53
    %p55 = scmp.ne.s32.totalorder %s44, %s45
    %p56 = scmp.eq.s32.totalorder %s15, 0
    %p57 = por %p55, %p56
    %p58 = scmp.ne.s32.totalorder %s44, %s45
    %p59 = scmp.eq.s32.totalorder %s16, 1
    %p60 = por %p58, %p59
    %p62 = scmp.ne.s32.totalorder %s45, %s61
    %p63 = scmp.eq.s32.totalorder %s16, 0
    %p64 = por %p62, %p63
    %s65 = ssub.s32 %s17, %s36
    %s66 = ssub.s32 %s18, %s32
    %s67 = sor.u32 %s65, %s66
    %s68 = ssub.s32 %s19, %s28
    %s69 = sor.u32 %s67, %s68
    %p70 = scmp.eq.s32.totalorder %s69, 0
    %s72 = sadd.s32 %s71, 1
    %s73 = scalar_select %p70, %s71, %s72
    %p76 = pneg %p70
    %p77 = scmp.eq.s32.totalorder %s10, 1
    %p78 = por %p76, %p77
    %p79 = scmp.ne.s32.totalorder %s71, %s74
    %p80 = scmp.eq.s32.totalorder %s10, 0
    %p81 = por %p79, %p80
    %p82 = scmp.ne.s32.totalorder %s71, %s74
    %p83 = scmp.eq.s32.totalorder %s15, 1
    %p84 = por %p82, %p83
    %p85 = scmp.ne.s32.totalorder %s74, %s75
    %p86 = scmp.eq.s32.totalorder %s15, 0
    %p87 = por %p85, %p86
    %p88 = scmp.ne.s32.totalorder %s74, %s75
    %p89 = scmp.eq.s32.totalorder %s16, 1
    %p90 = por %p88, %p89
    %p92 = scmp.ne.s32.totalorder %s75, %s91
    %p93 = scmp.eq.s32.totalorder %s16, 0
    %p94 = por %p92, %p93
    %s96 = sadd.s32 %s95, 1
    %p99 = scmp.eq.s32.totalorder %s10, 1
    %p100 = scmp.ne.s32.totalorder %s95, %s97
    %p101 = scmp.eq.s32.totalorder %s10, 0
    %p102 = por %p100, %p101
    %p103 = scmp.ne.s32.totalorder %s95, %s97
    %p104 = scmp.eq.s32.totalorder %s15, 1
    %p105 = por %p103, %p104
    %p106 = scmp.ne.s32.totalorder %s97, %s98
    %p107 = scmp.eq.s32.totalorder %s15, 0
    %p108 = por %p106, %p107
    %p109 = scmp.ne.s32.totalorder %s97, %s98
    %p110 = scmp.eq.s32.totalorder %s16, 1
    %p111 = por %p109, %p110
    %p113 = scmp.ne.s32.totalorder %s98, %s112
    %p114 = scmp.eq.s32.totalorder %s16, 0
    %p115 = por %p113, %p114
    %s117 = sadd.s32 %s116, 1
    %p120 = scmp.eq.s32.totalorder %s10, 1
    %p121 = scmp.ne.s32.totalorder %s116, %s118
    %p122 = scmp.eq.s32.totalorder %s10, 0
    %p123 = por %p121, %p122
    %p124 = scmp.ne.s32.totalorder %s116, %s118
    %p125 = scmp.eq.s32.totalorder %s15, 1
    %p126 = por %p124, %p125
    %p127 = scmp.ne.s32.totalorder %s118, %s119
    %p128 = scmp.eq.s32.totalorder %s15, 0
    %p129 = por %p127, %p128
    %p130 = scmp.ne.s32.totalorder %s118, %s119
    %p131 = scmp.eq.s32.totalorder %s16, 1
    %p132 = por %p130, %p131
    %p134 = scmp.ne.s32.totalorder %s119, %s133
    %p135 = scmp.eq.s32.totalorder %s16, 0
    %p136 = por %p134, %p135
    %s137 = ssub.s32 %s17, %s36
    %s138 = ssub.s32 %s18, %s32
    %s139 = sor.u32 %s137, %s138
    %p140 = scmp.eq.s32.totalorder %s139, 0
    %s142 = sadd.s32 %s141, 1
    %s143 = scalar_select %p140, %s141, %s142
    %p146 = pneg %p140
    %p147 = scmp.eq.s32.totalorder %s10, 1
    %p148 = por %p146, %p147
    %p149 = scmp.ne.s32.totalorder %s141, %s144
    %p150 = scmp.eq.s32.totalorder %s10, 0
    %p151 = por %p149, %p150
    %p152 = scmp.ne.s32.totalorder %s141, %s144
    %p153 = scmp.eq.s32.totalorder %s15, 1
    %p154 = por %p152, %p153
    %p155 = scmp.ne.s32.totalorder %s144, %s145
    %p156 = scmp.eq.s32.totalorder %s15, 0
    %p157 = por %p155, %p156
    %p158 = scmp.ne.s32.totalorder %s144, %s145
    %p159 = scmp.eq.s32.totalorder %s16, 1
    %p160 = por %p158, %p159
    %p162 = scmp.ne.s32.totalorder %s145, %s161
    %p163 = scmp.eq.s32.totalorder %s16, 0
    %p164 = por %p162, %p163
    %p165 = scmp.le.s32.totalorder 1, %s10
    %p166 = scmp.lt.s32.totalorder %s10, 3
    %p167 = pnand %p165, %p166
    %p168 = pneg %p167
    // Predicated region
    $region9: #{graph_convolution.1} parent=5 // pred_check
      _
    $region10: #{graph_convolution.1} parent=5 // pred_check_branch
      %170 = sbr.rel (%p167) target = $region12
    $region11: #{graph_convolution.1} parent=5 // pred_region
      %s171 = ssub.s32 %s10, 1
      // Predicated region
      $region13: #{graph_convolution.1} parent=11 // pred_check
        %p172 = pneg %p108
      $region14: #{graph_convolution.1} parent=11 // pred_check_branch
        %174 = sbr.rel (%p172) target = $region16
      $region15: #{graph_convolution.1} parent=11 // pred_region
        _
      $region16: #{graph_convolution.1} parent=11 // pred_fallthru
        _
      // Predicated region
      $region17: #{graph_convolution.1} parent=11 // pred_check
        %p175 = pneg %p129
      $region18: #{graph_convolution.1} parent=11 // pred_check_branch
        %177 = sbr.rel (%p175) target = $region20
      $region19: #{graph_convolution.1} parent=11 // pred_region
        _
      $region20: #{graph_convolution.1} parent=11 // pred_fallthru
        _
    $region12: #{graph_convolution.1} parent=5 // pred_fallthru
      _
    %p178 = scmp.lt.s32.totalorder %s10, 2
    // Predicated region
    $region21: #{graph_convolution.1} parent=5 // pred_check
      %p179 = pneg %p178
    $region22: #{graph_convolution.1} parent=5 // pred_check_branch
      %181 = sbr.rel (%p179) target = $region24
    $region23: #{graph_convolution.1} parent=5 // pred_region
      // Predicated region
      $region25: #{graph_convolution.1} parent=23 // pred_check
        %p182 = pneg %p51
      $region26: #{graph_convolution.1} parent=23 // pred_check_branch
        %184 = sbr.rel (%p182) target = $region28
      $region27: #{graph_convolution.1} parent=23 // pred_region
        %s185 = smul.u32 16, %s19
        %p186 = scmp.lt.s32.totalorder %s17, 1
        %s187 = scalar_select %p186, %s17, 1
        %p188 = scmp.lt.s32.totalorder %s185, 15
        %s189 = scalar_select %p188, %s185, 15
        %s190 = smul.addr %s187, 16
        %s191 = sadd.s32 %s189, %s190
        %s192 = smul.addr %s191, 8
        %s193 = scalar_lea.vmem %s0, %s192
        %s194 = smul.u32 16, %s19
      $region28: #{graph_convolution.1} parent=23 // pred_fallthru
        _
      // Predicated region
      $region29: #{graph_convolution.1} parent=23 // pred_check
        %p195 = pneg %p81
      $region30: #{graph_convolution.1} parent=23 // pred_check_branch
        %197 = sbr.rel (%p195) target = $region32
      $region31: #{graph_convolution.1} parent=23 // pred_region
        %s198 = smul.u32 16, %s18
        %p199 = scmp.lt.s32.totalorder %s17, 1
        %s200 = scalar_select %p199, %s17, 1
        %p201 = scmp.lt.s32.totalorder %s198, 15
        %s202 = scalar_select %p201, %s198, 15
        %p203 = scmp.lt.s32.totalorder %s19, 0
        %s204 = scalar_select %p203, %s19, 0
        %s205 = sadd.s32 %s204, %s202
        %s206 = smul.addr %s200, 16
        %s207 = sadd.s32 %s205, %s206
        %s208 = smul.addr %s207, 8
        %s209 = scalar_lea.vmem %s1, %s208
        %s210 = smul.u32 16, %s18
      $region32: #{graph_convolution.1} parent=23 // pred_fallthru
        _
    $region24: #{graph_convolution.1} parent=5 // pred_fallthru
      _
    %p211 = scmp.le.s32.totalorder 1, %s10
    %p212 = scmp.lt.s32.totalorder %s10, 3
    %p213 = pnand %p211, %p212
    %p214 = pneg %p213
    // Predicated region
    $region33: #{graph_convolution.1} parent=5 // pred_check
      _
    $region34: #{graph_convolution.1} parent=5 // pred_check_branch
      %216 = sbr.rel (%p213) target = $region36
    $region35: #{graph_convolution.1} parent=5 // pred_region
      %s217 = ssub.s32 %s10, 1
      %s218 = smul.u32 16, %s22
      %p219 = scmp.lt.s32.totalorder %s20, 1
      %s220 = scalar_select %p219, %s20, 1
      %p221 = scmp.lt.s32.totalorder %s218, 15
      %s222 = scalar_select %p221, %s218, 15
      %s223 = smul.addr %s220, 16
      %s224 = sadd.s32 %s222, %s223
      %s225 = smul.addr %s224, 8
      %s226 = scalar_lea.vmem %s0, %s225
      %p227 = pneg %p57
      %p228 = pneg %p54
      %s229 = smul.u32 16, %s21
      %p230 = scmp.lt.s32.totalorder %s20, 1
      %s231 = scalar_select %p230, %s20, 1
      %p232 = scmp.lt.s32.totalorder %s229, 15
      %s233 = scalar_select %p232, %s229, 15
      %p234 = scmp.lt.s32.totalorder %s22, 0
      %s235 = scalar_select %p234, %s22, 0
      %s236 = sadd.s32 %s235, %s233
      %s237 = smul.addr %s231, 16
      %s238 = sadd.s32 %s236, %s237
      %s239 = smul.addr %s238, 8
      %s240 = scalar_lea.vmem %s1, %s239
      %p241 = pneg %p87
      %p242 = pneg %p84
      %p243 = pneg %p108
      %p244 = pneg %p105
      %p245 = pneg %p129
      %p246 = pneg %p126
      %p247 = pneg %p157
      %p248 = pneg %p154
      %s249 = smul.u32 16, %s21
      %p250 = scmp.lt.s32.totalorder %s20, 1
      %s251 = scalar_select %p250, %s20, 1
      %p252 = scmp.lt.s32.totalorder %s249, 15
      %s253 = scalar_select %p252, %s249, 15
      %s254 = smul.addr %s251, 16
      %s255 = sadd.s32 %s253, %s254
      %s256 = smul.addr %s255, 8
      %s257 = scalar_lea.vmem %s4, %s256
      %s258 = smul.u32 16, %s22
      %p259 = scmp.lt.s32.totalorder %s20, 1
      %s260 = scalar_select %p259, %s20, 1
      %p261 = scmp.lt.s32.totalorder %s258, 15
      %s262 = scalar_select %p261, %s258, 15
      %s263 = smul.addr %s260, 16
      %s264 = sadd.s32 %s262, %s263
      %s265 = smul.addr %s264, 8
      %s266 = scalar_lea.vmem %s0, %s265
      %s267 = smul.u32 16, %s22
      %s268 = smul.u32 16, %s21
      %p269 = scmp.lt.s32.totalorder %s20, 1
      %s270 = scalar_select %p269, %s20, 1
      %p271 = scmp.lt.s32.totalorder %s268, 15
      %s272 = scalar_select %p271, %s268, 15
      %p273 = scmp.lt.s32.totalorder %s22, 0
      %s274 = scalar_select %p273, %s22, 0
      %s275 = sadd.s32 %s274, %s272
      %s276 = smul.addr %s270, 16
      %s277 = sadd.s32 %s275, %s276
      %s278 = smul.addr %s277, 8
      %s279 = scalar_lea.vmem %s1, %s278
      %s280 = smul.u32 16, %s21
      %s281 = smul.u32 16, %s21
      %p282 = scmp.lt.s32.totalorder %s20, 1
      %s283 = scalar_select %p282, %s20, 1
      %p284 = scmp.lt.s32.totalorder %s281, 15
      %s285 = scalar_select %p284, %s281, 15
      %s286 = smul.addr %s283, 16
      %s287 = sadd.s32 %s285, %s286
      %s288 = smul.addr %s287, 8
      %s289 = scalar_lea.vmem %s4, %s288
      %s290 = smul.u32 16, %s21
      %p291 = scmp.eq.s32.totalorder %s22, 0
      // Predicated region
      $region37: #{graph_convolution.1} parent=35 // pred_check
        %p292 = pneg %p291
      $region38: #{graph_convolution.1} parent=35 // pred_check_branch
        %294 = sbr.rel (%p292) target = $region40
      $region39: #{graph_convolution.1} parent=35 // pred_region
        %295 = vst [vmem:[%s289] sm:$0xff] 0.0
        %296 = vst [vmem:[%s289 + $0x8] sm:$0xff] 0.0
        %297 = vst [vmem:[%s289 + $0x10] sm:$0xff] 0.0
        %298 = vst [vmem:[%s289 + $0x18] sm:$0xff] 0.0
        %299 = vst [vmem:[%s289 + $0x20] sm:$0xff] 0.0
        %300 = vst [vmem:[%s289 + $0x28] sm:$0xff] 0.0
        %301 = vst [vmem:[%s289 + $0x30] sm:$0xff] 0.0
        %302 = vst [vmem:[%s289 + $0x38] sm:$0xff] 0.0
        %303 = vst [vmem:[%s289 + $0x40] sm:$0xff] 0.0
        %304 = vst [vmem:[%s289 + $0x48] sm:$0xff] 0.0
        %305 = vst [vmem:[%s289 + $0x50] sm:$0xff] 0.0
        %306 = vst [vmem:[%s289 + $0x58] sm:$0xff] 0.0
        %307 = vst [vmem:[%s289 + $0x60] sm:$0xff] 0.0
        %308 = vst [vmem:[%s289 + $0x68] sm:$0xff] 0.0
        %309 = vst [vmem:[%s289 + $0x70] sm:$0xff] 0.0
        %310 = vst [vmem:[%s289 + $0x78] sm:$0xff] 0.0
      $region40: #{graph_convolution.1} parent=35 // pred_fallthru
        _
      %v311 = vld [vmem:[%s266] sm:$0xff]
      %v312 = vld [vmem:[%s266 + $0x8] sm:$0xff]
      %v313 = vld [vmem:[%s266 + $0x10] sm:$0xff]
      %v314 = vld [vmem:[%s266 + $0x18] sm:$0xff]
      %v315 = vld [vmem:[%s266 + $0x20] sm:$0xff]
      %v316 = vld [vmem:[%s266 + $0x28] sm:$0xff]
      %v317 = vld [vmem:[%s266 + $0x30] sm:$0xff]
      %v318 = vld [vmem:[%s266 + $0x38] sm:$0xff]
      %v319 = vld [vmem:[%s266 + $0x40] sm:$0xff]
      %v320 = vld [vmem:[%s266 + $0x48] sm:$0xff]
      %v321 = vld [vmem:[%s266 + $0x50] sm:$0xff]
      %v322 = vld [vmem:[%s266 + $0x58] sm:$0xff]
      %v323 = vld [vmem:[%s266 + $0x60] sm:$0xff]
      %v324 = vld [vmem:[%s266 + $0x68] sm:$0xff]
      %v325 = vld [vmem:[%s266 + $0x70] sm:$0xff]
      %v326 = vld [vmem:[%s266 + $0x78] sm:$0xff]
      %v327 = vld [vmem:[%s2] sm:$0xff]
      %v328 = vld [vmem:[%s2 + $0x8] sm:$0xff]
      %v329 = vld [vmem:[%s2 + $0x10] sm:$0xff]
      %v330 = vld [vmem:[%s2 + $0x18] sm:$0xff]
      %v331 = vld [vmem:[%s2 + $0x20] sm:$0xff]
      %v332 = vld [vmem:[%s2 + $0x28] sm:$0xff]
      %v333 = vld [vmem:[%s2 + $0x30] sm:$0xff]
      %v334 = vld [vmem:[%s2 + $0x38] sm:$0xff]
      %v335 = vld [vmem:[%s2 + $0x40] sm:$0xff]
      %v336 = vld [vmem:[%s2 + $0x48] sm:$0xff]
      %v337 = vld [vmem:[%s2 + $0x50] sm:$0xff]
      %v338 = vld [vmem:[%s2 + $0x58] sm:$0xff]
      %v339 = vld [vmem:[%s2 + $0x60] sm:$0xff]
      %v340 = vld [vmem:[%s2 + $0x68] sm:$0xff]
      %v341 = vld [vmem:[%s2 + $0x70] sm:$0xff]
      %v342 = vld [vmem:[%s2 + $0x78] sm:$0xff]
      %343 = vmatprep.subr.mxu0 0.0
      %344 = vmatpush1.msra.mxu0 %v342
      %345 = vmatprep.subr.mxu0 0.0
      %346 = vmatpush1.msra.mxu0 %v341
      %347 = vmatprep.subr.mxu0 0.0
      %348 = vmatpush1.msra.mxu0 %v340
      %349 = vmatprep.subr.mxu0 0.0
      %350 = vmatpush1.msra.mxu0 %v339
      %351 = vmatprep.subr.mxu0 0.0
      %352 = vmatpush1.msra.mxu0 %v338
      %353 = vmatprep.subr.mxu0 0.0
      %354 = vmatpush1.msra.mxu0 %v337
      %355 = vmatprep.subr.mxu0 0.0
      %356 = vmatpush1.msra.mxu0 %v336
      %357 = vmatprep.subr.mxu0 0.0
      %358 = vmatpush1.msra.mxu0 %v335
      %359 = vmatprep.subr.mxu0 0.0
      %360 = vmatpush1.msra.mxu0 %v334
      %361 = vmatprep.subr.mxu0 0.0
      %362 = vmatpush1.msra.mxu0 %v333
      %363 = vmatprep.subr.mxu0 0.0
      %364 = vmatpush1.msra.mxu0 %v332
      %365 = vmatprep.subr.mxu0 0.0
      %366 = vmatpush1.msra.mxu0 %v331
      %367 = vmatprep.subr.mxu0 0.0
      %368 = vmatpush1.msra.mxu0 %v330
      %369 = vmatprep.subr.mxu0 0.0
      %370 = vmatpush1.msra.mxu0 %v329
      %371 = vmatprep.subr.mxu0 0.0
      %372 = vmatpush1.msra.mxu0 %v328
      %373 = vmatprep.subr.mxu0 0.0
      %374 = vmatpush1.msra.mxu0 %v327
      %375 = vmatprep.subr.mxu0 0.0
      %376 = vmatpush2.msra.mxu0 0.0
      %377 = vmatprep.subr.mxu0 0.0
      %378 = vmatpush2.msra.mxu0 0.0
      %379 = vmatprep.subr.mxu0 0.0
      %380 = vmatpush2.msra.mxu0 0.0
      %381 = vmatprep.subr.mxu0 0.0
      %382 = vmatpush2.msra.mxu0 0.0
      %383 = vmatprep.subr.mxu0 0.0
      %384 = vmatpush2.msra.mxu0 0.0
      %385 = vmatprep.subr.mxu0 0.0
      %386 = vmatpush2.msra.mxu0 0.0
      %387 = vmatprep.subr.mxu0 0.0
      %388 = vmatpush2.msra.mxu0 0.0
      %389 = vmatprep.subr.mxu0 0.0
      %390 = vmatpush2.msra.mxu0 0.0
      %391 = vmatprep.subr.mxu0 0.0
      %392 = vmatpush2.msra.mxu0 0.0
      %393 = vmatprep.subr.mxu0 0.0
      %394 = vmatpush2.msra.mxu0 0.0
      %395 = vmatprep.subr.mxu0 0.0
      %396 = vmatpush2.msra.mxu0 0.0
      %397 = vmatprep.subr.mxu0 0.0
      %398 = vmatpush2.msra.mxu0 0.0
      %399 = vmatprep.subr.mxu0 0.0
      %400 = vmatpush2.msra.mxu0 0.0
      %401 = vmatprep.subr.mxu0 0.0
      %402 = vmatpush2.msra.mxu0 0.0
      %403 = vmatprep.subr.mxu0 0.0
      %404 = vmatpush2.msra.mxu0 0.0
      %405 = vmatprep.subr.mxu0 0.0
      %406 = vmatpush2.msra.mxu0 0.0
      %407 = vmatprep.mubr.f32.mxu0 0.0
      %408 = vmatmul.mubr.f32.gmra.mxu0 %v311
      %v409 = vpop.f32.mrf.mxu0
      %v410 = vadd.f32 0.0, %v409
      %v411 = vpop.f32.mrf.mxu0
      %412 = vmatprep.mubr.f32.mxu0 0.0
      %413 = vmatmul.mubr.f32.gmra.mxu0 %v312
      %v414 = vpop.f32.mrf.mxu0
      %v415 = vadd.f32 0.0, %v414
      %v416 = vpop.f32.mrf.mxu0
      %417 = vmatprep.mubr.f32.mxu0 0.0
      %418 = vmatmul.mubr.f32.gmra.mxu0 %v313
      %v419 = vpop.f32.mrf.mxu0
      %v420 = vadd.f32 0.0, %v419
      %v421 = vpop.f32.mrf.mxu0
      %422 = vmatprep.mubr.f32.mxu0 0.0
      %423 = vmatmul.mubr.f32.gmra.mxu0 %v314
      %v424 = vpop.f32.mrf.mxu0
      %v425 = vadd.f32 0.0, %v424
      %v426 = vpop.f32.mrf.mxu0
      %427 = vmatprep.mubr.f32.mxu0 0.0
      %428 = vmatmul.mubr.f32.gmra.mxu0 %v315
      %v429 = vpop.f32.mrf.mxu0
      %v430 = vadd.f32 0.0, %v429
      %v431 = vpop.f32.mrf.mxu0
      %432 = vmatprep.mubr.f32.mxu0 0.0
      %433 = vmatmul.mubr.f32.gmra.mxu0 %v316
      %v434 = vpop.f32.mrf.mxu0
      %v435 = vadd.f32 0.0, %v434
      %v436 = vpop.f32.mrf.mxu0
      %437 = vmatprep.mubr.f32.mxu0 0.0
      %438 = vmatmul.mubr.f32.gmra.mxu0 %v317
      %v439 = vpop.f32.mrf.mxu0
      %v440 = vadd.f32 0.0, %v439
      %v441 = vpop.f32.mrf.mxu0
      %442 = vmatprep.mubr.f32.mxu0 0.0
      %443 = vmatmul.mubr.f32.gmra.mxu0 %v318
      %v444 = vpop.f32.mrf.mxu0
      %v445 = vadd.f32 0.0, %v444
      %v446 = vpop.f32.mrf.mxu0
      %447 = vmatprep.mubr.f32.mxu0 0.0
      %448 = vmatmul.mubr.f32.gmra.mxu0 %v319
      %v449 = vpop.f32.mrf.mxu0
      %v450 = vadd.f32 0.0, %v449
      %v451 = vpop.f32.mrf.mxu0
      %452 = vmatprep.mubr.f32.mxu0 0.0
      %453 = vmatmul.mubr.f32.gmra.mxu0 %v320
      %v454 = vpop.f32.mrf.mxu0
      %v455 = vadd.f32 0.0, %v454
      %v456 = vpop.f32.mrf.mxu0
      %457 = vmatprep.mubr.f32.mxu0 0.0
      %458 = vmatmul.mubr.f32.gmra.mxu0 %v321
      %v459 = vpop.f32.mrf.mxu0
      %v460 = vadd.f32 0.0, %v459
      %v461 = vpop.f32.mrf.mxu0
      %462 = vmatprep.mubr.f32.mxu0 0.0
      %463 = vmatmul.mubr.f32.gmra.mxu0 %v322
      %v464 = vpop.f32.mrf.mxu0
      %v465 = vadd.f32 0.0, %v464
      %v466 = vpop.f32.mrf.mxu0
      %467 = vmatprep.mubr.f32.mxu0 0.0
      %468 = vmatmul.mubr.f32.gmra.mxu0 %v323
      %v469 = vpop.f32.mrf.mxu0
      %v470 = vadd.f32 0.0, %v469
      %v471 = vpop.f32.mrf.mxu0
      %472 = vmatprep.mubr.f32.mxu0 0.0
      %473 = vmatmul.mubr.f32.gmra.mxu0 %v324
      %v474 = vpop.f32.mrf.mxu0
      %v475 = vadd.f32 0.0, %v474
      %v476 = vpop.f32.mrf.mxu0
      %477 = vmatprep.mubr.f32.mxu0 0.0
      %478 = vmatmul.mubr.f32.gmra.mxu0 %v325
      %v479 = vpop.f32.mrf.mxu0
      %v480 = vadd.f32 0.0, %v479
      %v481 = vpop.f32.mrf.mxu0
      %482 = vmatprep.mubr.f32.mxu0 0.0
      %483 = vmatmul.mubr.f32.gmra.mxu0 %v326
      %v484 = vpop.f32.mrf.mxu0
      %v485 = vadd.f32 0.0, %v484
      %v486 = vpop.f32.mrf.mxu0
      %487 = vdwg.mxu0
      %v488 = vld [vmem:[%s289] sm:$0xff]
      %v489 = vld [vmem:[%s289 + $0x8] sm:$0xff]
      %v490 = vld [vmem:[%s289 + $0x10] sm:$0xff]
      %v491 = vld [vmem:[%s289 + $0x18] sm:$0xff]
      %v492 = vld [vmem:[%s289 + $0x20] sm:$0xff]
      %v493 = vld [vmem:[%s289 + $0x28] sm:$0xff]
      %v494 = vld [vmem:[%s289 + $0x30] sm:$0xff]
      %v495 = vld [vmem:[%s289 + $0x38] sm:$0xff]
      %v496 = vld [vmem:[%s289 + $0x40] sm:$0xff]
      %v497 = vld [vmem:[%s289 + $0x48] sm:$0xff]
      %v498 = vld [vmem:[%s289 + $0x50] sm:$0xff]
      %v499 = vld [vmem:[%s289 + $0x58] sm:$0xff]
      %v500 = vld [vmem:[%s289 + $0x60] sm:$0xff]
      %v501 = vld [vmem:[%s289 + $0x68] sm:$0xff]
      %v502 = vld [vmem:[%s289 + $0x70] sm:$0xff]
      %v503 = vld [vmem:[%s289 + $0x78] sm:$0xff]
      %v504 = vld [vmem:[%s279] sm:$0xff]
      %v505 = vld [vmem:[%s279 + $0x8] sm:$0xff]
      %v506 = vld [vmem:[%s279 + $0x10] sm:$0xff]
      %v507 = vld [vmem:[%s279 + $0x18] sm:$0xff]
      %v508 = vld [vmem:[%s279 + $0x20] sm:$0xff]
      %v509 = vld [vmem:[%s279 + $0x28] sm:$0xff]
      %v510 = vld [vmem:[%s279 + $0x30] sm:$0xff]
      %v511 = vld [vmem:[%s279 + $0x38] sm:$0xff]
      %v512 = vld [vmem:[%s279 + $0x40] sm:$0xff]
      %v513 = vld [vmem:[%s279 + $0x48] sm:$0xff]
      %v514 = vld [vmem:[%s279 + $0x50] sm:$0xff]
      %v515 = vld [vmem:[%s279 + $0x58] sm:$0xff]
      %v516 = vld [vmem:[%s279 + $0x60] sm:$0xff]
      %v517 = vld [vmem:[%s279 + $0x68] sm:$0xff]
      %v518 = vld [vmem:[%s279 + $0x70] sm:$0xff]
      %v519 = vld [vmem:[%s279 + $0x78] sm:$0xff]
      %520 = vmatprep.subr.mxu0 0.0
      %521 = vmatpush1.msra.mxu0 %v485
      %522 = vmatprep.subr.mxu0 0.0
      %523 = vmatpush1.msra.mxu0 %v480
      %524 = vmatprep.subr.mxu0 0.0
      %525 = vmatpush1.msra.mxu0 %v475
      %526 = vmatprep.subr.mxu0 0.0
      %527 = vmatpush1.msra.mxu0 %v470
      %528 = vmatprep.subr.mxu0 0.0
      %529 = vmatpush1.msra.mxu0 %v465
      %530 = vmatprep.subr.mxu0 0.0
      %531 = vmatpush1.msra.mxu0 %v460
      %532 = vmatprep.subr.mxu0 0.0
      %533 = vmatpush1.msra.mxu0 %v455
      %534 = vmatprep.subr.mxu0 0.0
      %535 = vmatpush1.msra.mxu0 %v450
      %536 = vmatprep.subr.mxu0 0.0
      %537 = vmatpush1.msra.mxu0 %v445
      %538 = vmatprep.subr.mxu0 0.0
      %539 = vmatpush1.msra.mxu0 %v440
      %540 = vmatprep.subr.mxu0 0.0
      %541 = vmatpush1.msra.mxu0 %v435
      %542 = vmatprep.subr.mxu0 0.0
      %543 = vmatpush1.msra.mxu0 %v430
      %544 = vmatprep.subr.mxu0 0.0
      %545 = vmatpush1.msra.mxu0 %v425
      %546 = vmatprep.subr.mxu0 0.0
      %547 = vmatpush1.msra.mxu0 %v420
      %548 = vmatprep.subr.mxu0 0.0
      %549 = vmatpush1.msra.mxu0 %v415
      %550 = vmatprep.subr.mxu0 0.0
      %551 = vmatpush1.msra.mxu0 %v410
      %552 = vmatprep.subr.mxu0 0.0
      %553 = vmatpush2.msra.mxu0 0.0
      %554 = vmatprep.subr.mxu0 0.0
      %555 = vmatpush2.msra.mxu0 0.0
      %556 = vmatprep.subr.mxu0 0.0
      %557 = vmatpush2.msra.mxu0 0.0
      %558 = vmatprep.subr.mxu0 0.0
      %559 = vmatpush2.msra.mxu0 0.0
      %560 = vmatprep.subr.mxu0 0.0
      %561 = vmatpush2.msra.mxu0 0.0
      %562 = vmatprep.subr.mxu0 0.0
      %563 = vmatpush2.msra.mxu0 0.0
      %564 = vmatprep.subr.mxu0 0.0
      %565 = vmatpush2.msra.mxu0 0.0
      %566 = vmatprep.subr.mxu0 0.0
      %567 = vmatpush2.msra.mxu0 0.0
      %568 = vmatprep.subr.mxu0 0.0
      %569 = vmatpush2.msra.mxu0 0.0
      %570 = vmatprep.subr.mxu0 0.0
      %571 = vmatpush2.msra.mxu0 0.0
      %572 = vmatprep.subr.mxu0 0.0
      %573 = vmatpush2.msra.mxu0 0.0
      %574 = vmatprep.subr.mxu0 0.0
      %575 = vmatpush2.msra.mxu0 0.0
      %576 = vmatprep.subr.mxu0 0.0
      %577 = vmatpush2.msra.mxu0 0.0
      %578 = vmatprep.subr.mxu0 0.0
      %579 = vmatpush2.msra.mxu0 0.0
      %580 = vmatprep.subr.mxu0 0.0
      %581 = vmatpush2.msra.mxu0 0.0
      %582 = vmatprep.subr.mxu0 0.0
      %583 = vmatpush2.msra.mxu0 0.0
      %584 = vmatprep.mubr.f32.mxu0 0.0
      %585 = vmatmul.mubr.f32.gmra.mxu0 %v504
      %v586 = vpop.f32.mrf.mxu0
      %v587 = vadd.f32 0.0, %v586
      %v588 = vpop.f32.mrf.mxu0
      %589 = vmatprep.mubr.f32.mxu0 0.0
      %590 = vmatmul.mubr.f32.gmra.mxu0 %v505
      %v591 = vpop.f32.mrf.mxu0
      %v592 = vadd.f32 0.0, %v591
      %v593 = vpop.f32.mrf.mxu0
      %594 = vmatprep.mubr.f32.mxu0 0.0
      %595 = vmatmul.mubr.f32.gmra.mxu0 %v506
      %v596 = vpop.f32.mrf.mxu0
      %v597 = vadd.f32 0.0, %v596
      %v598 = vpop.f32.mrf.mxu0
      %599 = vmatprep.mubr.f32.mxu0 0.0
      %600 = vmatmul.mubr.f32.gmra.mxu0 %v507
      %v601 = vpop.f32.mrf.mxu0
      %v602 = vadd.f32 0.0, %v601
      %v603 = vpop.f32.mrf.mxu0
      %604 = vmatprep.mubr.f32.mxu0 0.0
      %605 = vmatmul.mubr.f32.gmra.mxu0 %v508
      %v606 = vpop.f32.mrf.mxu0
      %v607 = vadd.f32 0.0, %v606
      %v608 = vpop.f32.mrf.mxu0
      %609 = vmatprep.mubr.f32.mxu0 0.0
      %610 = vmatmul.mubr.f32.gmra.mxu0 %v509
      %v611 = vpop.f32.mrf.mxu0
      %v612 = vadd.f32 0.0, %v611
      %v613 = vpop.f32.mrf.mxu0
      %614 = vmatprep.mubr.f32.mxu0 0.0
      %615 = vmatmul.mubr.f32.gmra.mxu0 %v510
      %v616 = vpop.f32.mrf.mxu0
      %v617 = vadd.f32 0.0, %v616
      %v618 = vpop.f32.mrf.mxu0
      %619 = vmatprep.mubr.f32.mxu0 0.0
      %620 = vmatmul.mubr.f32.gmra.mxu0 %v511
      %v621 = vpop.f32.mrf.mxu0
      %v622 = vadd.f32 0.0, %v621
      %v623 = vpop.f32.mrf.mxu0
      %624 = vmatprep.mubr.f32.mxu0 0.0
      %625 = vmatmul.mubr.f32.gmra.mxu0 %v512
      %v626 = vpop.f32.mrf.mxu0
      %v627 = vadd.f32 0.0, %v626
      %v628 = vpop.f32.mrf.mxu0
      %629 = vmatprep.mubr.f32.mxu0 0.0
      %630 = vmatmul.mubr.f32.gmra.mxu0 %v513
      %v631 = vpop.f32.mrf.mxu0
      %v632 = vadd.f32 0.0, %v631
      %v633 = vpop.f32.mrf.mxu0
      %634 = vmatprep.mubr.f32.mxu0 0.0
      %635 = vmatmul.mubr.f32.gmra.mxu0 %v514
      %v636 = vpop.f32.mrf.mxu0
      %v637 = vadd.f32 0.0, %v636
      %v638 = vpop.f32.mrf.mxu0
      %639 = vmatprep.mubr.f32.mxu0 0.0
      %640 = vmatmul.mubr.f32.gmra.mxu0 %v515
      %v641 = vpop.f32.mrf.mxu0
      %v642 = vadd.f32 0.0, %v641
      %v643 = vpop.f32.mrf.mxu0
      %644 = vmatprep.mubr.f32.mxu0 0.0
      %645 = vmatmul.mubr.f32.gmra.mxu0 %v516
      %v646 = vpop.f32.mrf.mxu0
      %v647 = vadd.f32 0.0, %v646
      %v648 = vpop.f32.mrf.mxu0
      %649 = vmatprep.mubr.f32.mxu0 0.0
      %650 = vmatmul.mubr.f32.gmra.mxu0 %v517
      %v651 = vpop.f32.mrf.mxu0
      %v652 = vadd.f32 0.0, %v651
      %v653 = vpop.f32.mrf.mxu0
      %654 = vmatprep.mubr.f32.mxu0 0.0
      %655 = vmatmul.mubr.f32.gmra.mxu0 %v518
      %v656 = vpop.f32.mrf.mxu0
      %v657 = vadd.f32 0.0, %v656
      %v658 = vpop.f32.mrf.mxu0
      %659 = vmatprep.mubr.f32.mxu0 0.0
      %660 = vmatmul.mubr.f32.gmra.mxu0 %v519
      %v661 = vpop.f32.mrf.mxu0
      %v662 = vadd.f32 0.0, %v661
      %v663 = vpop.f32.mrf.mxu0
      %664 = vdwg.mxu0
      %v665 = vadd.f32 %v488, %v587
      %v666 = vadd.f32 %v489, %v592
      %v667 = vadd.f32 %v490, %v597
      %v668 = vadd.f32 %v491, %v602
      %v669 = vadd.f32 %v492, %v607
      %v670 = vadd.f32 %v493, %v612
      %v671 = vadd.f32 %v494, %v617
      %v672 = vadd.f32 %v495, %v622
      %v673 = vadd.f32 %v496, %v627
      %v674 = vadd.f32 %v497, %v632
      %v675 = vadd.f32 %v498, %v637
      %v676 = vadd.f32 %v499, %v642
      %v677 = vadd.f32 %v500, %v647
      %v678 = vadd.f32 %v501, %v652
      %v679 = vadd.f32 %v502, %v657
      %v680 = vadd.f32 %v503, %v662
      %681 = vst [vmem:[%s289] sm:$0xff] %v665
      %682 = vst [vmem:[%s289 + $0x8] sm:$0xff] %v666
      %683 = vst [vmem:[%s289 + $0x10] sm:$0xff] %v667
      %684 = vst [vmem:[%s289 + $0x18] sm:$0xff] %v668
      %685 = vst [vmem:[%s289 + $0x20] sm:$0xff] %v669
      %686 = vst [vmem:[%s289 + $0x28] sm:$0xff] %v670
      %687 = vst [vmem:[%s289 + $0x30] sm:$0xff] %v671
      %688 = vst [vmem:[%s289 + $0x38] sm:$0xff] %v672
      %689 = vst [vmem:[%s289 + $0x40] sm:$0xff] %v673
      %690 = vst [vmem:[%s289 + $0x48] sm:$0xff] %v674
      %691 = vst [vmem:[%s289 + $0x50] sm:$0xff] %v675
      %692 = vst [vmem:[%s289 + $0x58] sm:$0xff] %v676
      %693 = vst [vmem:[%s289 + $0x60] sm:$0xff] %v677
      %694 = vst [vmem:[%s289 + $0x68] sm:$0xff] %v678
      %695 = vst [vmem:[%s289 + $0x70] sm:$0xff] %v679
      %696 = vst [vmem:[%s289 + $0x78] sm:$0xff] %v680
      // Predicated region
      $region41: #{graph_convolution.1} parent=35 // pred_check
        %p697 = pneg %p291
      $region42: #{graph_convolution.1} parent=35 // pred_check_branch
        %699 = sbr.rel (%p697) target = $region44
      $region43: #{graph_convolution.1} parent=35 // pred_region
        %v700 = vld [vmem:[%s289] sm:$0xff]
        %v701 = vld [vmem:[%s289 + $0x8] sm:$0xff]
        %v702 = vld [vmem:[%s289 + $0x10] sm:$0xff]
        %v703 = vld [vmem:[%s289 + $0x18] sm:$0xff]
        %v704 = vld [vmem:[%s289 + $0x20] sm:$0xff]
        %v705 = vld [vmem:[%s289 + $0x28] sm:$0xff]
        %v706 = vld [vmem:[%s289 + $0x30] sm:$0xff]
        %v707 = vld [vmem:[%s289 + $0x38] sm:$0xff]
        %v708 = vld [vmem:[%s289 + $0x40] sm:$0xff]
        %v709 = vld [vmem:[%s289 + $0x48] sm:$0xff]
        %v710 = vld [vmem:[%s289 + $0x50] sm:$0xff]
        %v711 = vld [vmem:[%s289 + $0x58] sm:$0xff]
        %v712 = vld [vmem:[%s289 + $0x60] sm:$0xff]
        %v713 = vld [vmem:[%s289 + $0x68] sm:$0xff]
        %v714 = vld [vmem:[%s289 + $0x70] sm:$0xff]
        %v715 = vld [vmem:[%s289 + $0x78] sm:$0xff]
        %v716 = vld [vmem:[%s3] sm:$0x1]
        %v718 = vlaneseq
        %v719 = vshrl.u32 %v718, 7
        %v720 = vsub.s32 0, %v719
        %v721 = vrot.slane %v716, %v720
        %v723 = vadd.f32 %v700, %v721
        %v724 = vadd.f32 %v701, %v721
        %v725 = vadd.f32 %v702, %v721
        %v726 = vadd.f32 %v703, %v721
        %v727 = vadd.f32 %v704, %v721
        %v728 = vadd.f32 %v705, %v721
        %v729 = vadd.f32 %v706, %v721
        %v730 = vadd.f32 %v707, %v721
        %v731 = vadd.f32 %v708, %v721
        %v732 = vadd.f32 %v709, %v721
        %v733 = vadd.f32 %v710, %v721
        %v734 = vadd.f32 %v711, %v721
        %v735 = vadd.f32 %v712, %v721
        %v736 = vadd.f32 %v713, %v721
        %v737 = vadd.f32 %v714, %v721
        %v738 = vadd.f32 %v715, %v721
        %739 = vst [vmem:[%s289] sm:$0xff] %v723
        %740 = vst [vmem:[%s289 + $0x8] sm:$0xff] %v724
        %741 = vst [vmem:[%s289 + $0x10] sm:$0xff] %v725
        %742 = vst [vmem:[%s289 + $0x18] sm:$0xff] %v726
        %743 = vst [vmem:[%s289 + $0x20] sm:$0xff] %v727
        %744 = vst [vmem:[%s289 + $0x28] sm:$0xff] %v728
        %745 = vst [vmem:[%s289 + $0x30] sm:$0xff] %v729
        %746 = vst [vmem:[%s289 + $0x38] sm:$0xff] %v730
        %747 = vst [vmem:[%s289 + $0x40] sm:$0xff] %v731
        %748 = vst [vmem:[%s289 + $0x48] sm:$0xff] %v732
        %749 = vst [vmem:[%s289 + $0x50] sm:$0xff] %v733
        %750 = vst [vmem:[%s289 + $0x58] sm:$0xff] %v734
        %751 = vst [vmem:[%s289 + $0x60] sm:$0xff] %v735
        %752 = vst [vmem:[%s289 + $0x68] sm:$0xff] %v736
        %753 = vst [vmem:[%s289 + $0x70] sm:$0xff] %v737
        %754 = vst [vmem:[%s289 + $0x78] sm:$0xff] %v738
      $region44: #{graph_convolution.1} parent=35 // pred_fallthru
        _
      %s755 = smul.u32 16, %s21
      %p756 = scmp.lt.s32.totalorder %s20, 1
      %s757 = scalar_select %p756, %s20, 1
      %p758 = scmp.lt.s32.totalorder %s755, 15
      %s759 = scalar_select %p758, %s755, 15
      %s760 = smul.addr %s757, 16
      %s761 = sadd.s32 %s759, %s760
      %s762 = smul.addr %s761, 8
      %s763 = scalar_lea.vmem %s4, %s762
      // Predicated region
      $region45: #{graph_convolution.1} parent=35 // pred_check
        %p764 = pneg %p154
      $region46: #{graph_convolution.1} parent=35 // pred_check_branch
        %766 = sbr.rel (%p764) target = $region48
      $region47: #{graph_convolution.1} parent=35 // pred_region
        %s767 = smul.u32 16, %s21
      $region48: #{graph_convolution.1} parent=35 // pred_fallthru
        _
    $region36: #{graph_convolution.1} parent=5 // pred_fallthru
      _
    %p768 = scmp.le.s32.totalorder 2, %s10
    // Predicated region
    $region49: #{graph_convolution.1} parent=5 // pred_check
      %p769 = pneg %p768
    $region50: #{graph_convolution.1} parent=5 // pred_check_branch
      %771 = sbr.rel (%p769) target = $region52
    $region51: #{graph_convolution.1} parent=5 // pred_region
      %s772 = ssub.s32 %s10, 2
      // Predicated region
      $region53: #{graph_convolution.1} parent=51 // pred_check
        %p773 = pneg %p160
      $region54: #{graph_convolution.1} parent=51 // pred_check_branch
        %775 = sbr.rel (%p773) target = $region56
      $region55: #{graph_convolution.1} parent=51 // pred_region
        %s776 = smul.u32 16, %s24
        %p777 = scmp.lt.s32.totalorder %s23, 1
        %s778 = scalar_select %p777, %s23, 1
        %p779 = scmp.lt.s32.totalorder %s776, 15
        %s780 = scalar_select %p779, %s776, 15
        %s781 = smul.addr %s778, 16
        %s782 = sadd.s32 %s780, %s781
        %s783 = smul.addr %s782, 8
        %s784 = scalar_lea.vmem %s4, %s783
      $region56: #{graph_convolution.1} parent=51 // pred_fallthru
        _
    $region52: #{graph_convolution.1} parent=5 // pred_fallthru
      _
  $region6: #{graph_convolution.1} parent=0 // loop_footer
    %s14 = sadd.s32 1, %s10
  $region7: #{graph_convolution.1} parent=0 // loop_footer_branch
    %9 = sbr.rel target = $region3
  $region8: #{graph_convolution.1} parent=0 // loop_exit
    _

</llo_original>
